<compile_context>
chip_gen: v7x
topology: tpu7x:2x2x1
jax: 0.10.0
libtpu: 0.0.40
codegen_flags: <defaults>
</compile_context>

<pallas_src>
import math
import numpy as np
import jax
import jax.numpy as jnp
from jax import lax
from jax.experimental import pallas as pl
from jax.experimental.pallas import tpu as pltpu


def _round_up(x, m):
    return (x + m - 1) // m * m


def _pick_seq_tile(s_pad, batch):
    """Largest multiple-of-8 divisor of s_pad (<= 512); keep >= 2 grid steps."""
    ts = min(512, s_pad)
    while s_pad % ts:
        ts -= 8
    # v7x has 2 TensorCores: make sure the parallel grid has at least 2 tiles.
    if batch * (s_pad // ts) < 2 and ts % 16 == 0:
        ts //= 2
    return ts


def _embed_kernel(tok_ref, table_ref, pe_ref, out_ref):
    # tok_ref:   (1, TS, 1)  int32 token ids for this (batch, seq-tile)
    # table_ref: (3V, D)     bf16 stacked [hi; mid; lo] split of the f32 table
    #                        (resident in VMEM, single-buffered)
    # pe_ref:    (TS, D)     f32 positional-encoding rows for this seq tile
    # out_ref:   (1, TS, D)  f32 output tile
    ts = tok_ref.shape[1]
    v3 = table_ref.shape[0]
    v = v3 // 3

    tok = tok_ref[0]                                          # (TS, 1) int32
    col = lax.broadcasted_iota(jnp.int32, (ts, v3), 1)        # (TS, 3V)

    # One-hot with hits at tok, tok+V, tok+2V: a single MXU pass then sums the
    # hi/mid/lo bf16 chunks of the selected f32 row inside the f32 accumulator
    # (error ~2^-24 relative) -- no precision=HIGHEST needed.
    hit = (col == tok) | (col == tok + v) | (col == tok + 2 * v)
    onehot = hit.astype(jnp.float32).astype(jnp.bfloat16)     # (TS, 3V) bf16

    emb = jnp.dot(onehot, table_ref[...],
                  preferred_element_type=jnp.float32)         # (TS, D) f32

    # Positional encodings arrive as a plain BlockSpec tile: just add.
    out_ref[0] = (emb + pe_ref[...]).astype(out_ref.dtype)


def _split_table_bf16(emb_table):
    """f32 (V, D) -> (3V, D) bf16 stacked [hi; mid; lo], hi+mid+lo ~= table."""
    t = emb_table.astype(jnp.float32)
    hi = t.astype(jnp.bfloat16)
    r1 = t - hi.astype(jnp.float32)
    mid = r1.astype(jnp.bfloat16)
    r2 = r1 - mid.astype(jnp.float32)
    lo = r2.astype(jnp.bfloat16)
    return jnp.concatenate([hi, mid, lo], axis=0)


def embedding_forward(token_ids, emb_table, pos_enc):
    """token_ids: (B, S) int; emb_table: (V, D) f32; pos_enc: (MAX_S, D) f32, MAX_S >= S."""
    B, S = token_ids.shape
    V, D = emb_table.shape
    MAX_S = pos_enc.shape[0]

    S_pad = _round_up(S, 8)
    TS = _pick_seq_tile(S_pad, B)
    num_s_tiles = S_pad // TS

    tok = jnp.clip(token_ids.astype(jnp.int32), 0, V - 1)
    if S_pad != S:
        tok = jnp.pad(tok, ((0, 0), (0, S_pad - S)))
    tok = tok.reshape(B, S_pad, 1)

    pe = pos_enc.astype(jnp.float32)
    if MAX_S < S_pad:
        pe = jnp.pad(pe, ((0, S_pad - MAX_S), (0, 0)))

    # Stacked bf16 table stays fully resident in VMEM (constant block index).
    # TODO(synk): for vocabularies where 3*V*D*2 bytes no longer fits VMEM
    # (esp. v7x 64 MiB), switch to a scalar-prefetch / DMA row-gather design.
    table3 = _split_table_bf16(emb_table)                      # (3V, D) bf16

    # Explicit VMEM budget (single-buffered table + double-buffered tiles +
    # in-kernel temporaries), 2x headroom, capped at v7x's 64 MiB.
    table_bytes = 3 * V * D * 2
    tile_bytes = 2 * TS * D * 4 * 2 + 2 * TS * 4               # PE + out + ids
    temp_bytes = TS * 3 * V * 6 + TS * D * 4                   # one-hot + acc
    vmem_limit = int(min(64 * 2**20,
                         max(2 * (table_bytes + tile_bytes + temp_bytes),
                             16 * 2**20)))

    out = pl.pallas_call(
        _embed_kernel,
        out_shape=jax.ShapeDtypeStruct((B, S_pad, D), emb_table.dtype),
        grid=(B, num_s_tiles),
        in_specs=[
            pl.BlockSpec((1, TS, 1), lambda b, s: (b, s, 0)),          # token ids
            pl.BlockSpec((3 * V, D), lambda b, s: (0, 0),
                         pipeline_mode=pl.Buffered(1)),                # resident table
            pl.BlockSpec((TS, D), lambda b, s: (s, 0)),                # PE tile
        ],
        out_specs=pl.BlockSpec((1, TS, D), lambda b, s: (b, s, 0)),
        compiler_params=pltpu.CompilerParams(
            dimension_semantics=("parallel", "parallel"),
            vmem_limit_bytes=vmem_limit),
    )(tok, table3, pe)

    if S_pad != S:
        out = out[:, :S, :]
    # TODO(synk): dropout is eval-mode identity here; train-mode dropout would
    # use pltpu.prng_seed + pltpu.stateful_bernoulli inside the kernel.
    return out


def make_positional_encodings(max_sequence_length, embedding_dim):
    # Exact reproduction of the PyTorch __init__ loop (note the 2*col exponent).
    pe = np.zeros((max_sequence_length, embedding_dim), dtype=np.float32)
    for row in range(max_sequence_length):
        for col in range(0, embedding_dim, 2):
            denominator = math.pow(10000, 2 * col / embedding_dim)
            pe[row, col] = math.sin(row / denominator)
            pe[row, col + 1] = math.cos(row / denominator)
    return jnp.asarray(pe)


if __name__ == "__main__":
    # Module hyper-parameters (small, lane-friendly).
    vocab_size = 64
    embedding_dim = 128
    max_sequence_length = 32
    dropout = 0.1           # unused at eval time

    B, S = 2, 16

    key = jax.random.PRNGKey(0)
    k_emb, k_idx = jax.random.split(key)

    # nn.Embedding default init: N(0, 1)
    emb_table = jax.random.normal(k_emb, (vocab_size, embedding_dim), dtype=jnp.float32)
    pos_enc = make_positional_encodings(max_sequence_length, embedding_dim)
    token_ids = jax.random.randint(k_idx, (B, S), 0, vocab_size, dtype=jnp.int32)

    out = embedding_forward(token_ids, emb_table, pos_enc)
    out = jax.block_until_ready(out)

    # Pure-JAX reference check.
    ref = emb_table[token_ids] + pos_enc[:S, :]
    assert out.shape == (B, S, embedding_dim)
    np.testing.assert_allclose(np.asarray(out), np.asarray(ref), rtol=1e-5, atol=1e-5)

    print("KERNEL_OK")
</pallas_src>

<mosaic_0001>
module attributes {stable_mosaic.version = 11 : i64} {
  func.func @_embed_kernel(%arg0: i32, %arg1: i32, %arg2: memref<1x16x1xi32, #tpu.memory_space<vmem>>, %arg3: memref<192x128xbf16, #tpu.memory_space<vmem>>, %arg4: memref<16x128xf32, #tpu.memory_space<vmem>>, %arg5: memref<1x16x128xf32, #tpu.memory_space<vmem>>) attributes {dimension_semantics = [#tpu.dimension_semantics<parallel>, #tpu.dimension_semantics<parallel>], iteration_bounds = array<i64: 2, 1>, scalar_prefetch = 0 : i64, scratch_operands = 0 : i64, tpu.core_type = #tpu.core_type<tc>, window_params = [{transform_indices = @transform_0, window_bounds = array<i64: 1, 16, 1>}, {pipeline_mode = #tpu.pipeline_mode<synchronous>, transform_indices = @transform_1, window_bounds = array<i64: 192, 128>}, {transform_indices = @transform_2, window_bounds = array<i64: 16, 128>}, {transform_indices = @transform_3, window_bounds = array<i64: 1, 16, 128>}]} {
    %c0 = arith.constant 0 : index
    %c0_0 = arith.constant 0 : index
    %c0_1 = arith.constant 0 : index
    %0 = vector.load %arg2[%c0, %c0_0, %c0_1] : memref<1x16x1xi32, #tpu.memory_space<vmem>>, vector<1x16x1xi32>
    %1 = vector.shape_cast %0 : vector<1x16x1xi32> to vector<16x1xi32>
    %2 = tpu.iota {dimensions = array<i32: 1>} : vector<16x192xi32>
    %3 = vector.broadcast %1 : vector<16x1xi32> to vector<16x192xi32>
    %4 = arith.cmpi eq, %2, %3 : vector<16x192xi32>
    %c64_i32 = arith.constant 64 : i32
    %5 = vector.broadcast %c64_i32 : i32 to vector<16x1xi32>
    %6 = arith.addi %1, %5 : vector<16x1xi32>
    %7 = vector.broadcast %6 : vector<16x1xi32> to vector<16x192xi32>
    %8 = arith.cmpi eq, %2, %7 : vector<16x192xi32>
    %9 = arith.ori %4, %8 : vector<16x192xi1>
    %c128_i32 = arith.constant 128 : i32
    %10 = vector.broadcast %c128_i32 : i32 to vector<16x1xi32>
    %11 = arith.addi %1, %10 : vector<16x1xi32>
    %12 = vector.broadcast %11 : vector<16x1xi32> to vector<16x192xi32>
    %13 = arith.cmpi eq, %2, %12 : vector<16x192xi32>
    %14 = arith.ori %9, %13 : vector<16x192xi1>
    %15 = arith.extui %14 : vector<16x192xi1> to vector<16x192xi32>
    %16 = arith.sitofp %15 : vector<16x192xi32> to vector<16x192xf32>
    %17 = arith.truncf %16 : vector<16x192xf32> to vector<16x192xbf16>
    %c0_2 = arith.constant 0 : index
    %c0_3 = arith.constant 0 : index
    %18 = vector.load %arg3[%c0_2, %c0_3] : memref<192x128xbf16, #tpu.memory_space<vmem>>, vector<192x128xbf16>
    %cst = arith.constant dense<0.000000e+00> : vector<16x128xf32>
    %19 = tpu.matmul %17, %18, %cst {dimension_numbers = #tpu.dot_dimension_numbers<[1], [0], [0], [1], [0, 0, 1, 1], [], []>} : vector<16x192xbf16>, vector<192x128xbf16>, vector<16x128xf32> -> vector<16x128xf32>
    %c0_4 = arith.constant 0 : index
    %c0_5 = arith.constant 0 : index
    %20 = vector.load %arg4[%c0_4, %c0_5] : memref<16x128xf32, #tpu.memory_space<vmem>>, vector<16x128xf32>
    %21 = arith.addf %19, %20 : vector<16x128xf32>
    %c0_6 = arith.constant 0 : index
    %c0_7 = arith.constant 0 : index
    %c0_8 = arith.constant 0 : index
    %22 = vector.load %arg5[%c0_6, %c0_7, %c0_8] : memref<1x16x128xf32, #tpu.memory_space<vmem>>, vector<1x16x128xf32>
    %23 = vector.shape_cast %22 : vector<1x16x128xf32> to vector<16x128xf32>
    %24 = vector.shape_cast %21 : vector<16x128xf32> to vector<1x16x128xf32>
    tpu.vector_store %arg5[%c0_6, %c0_7, %c0_8], %24 {strides = array<i32>} : memref<1x16x128xf32, #tpu.memory_space<vmem>>, vector<1x16x128xf32>,
    return
  }
  func.func @transform_0(%arg0: i32, %arg1: i32) -> (i32, i32, i32) {
    %c0_i32 = arith.constant 0 : i32
    %c0_i32_0 = arith.constant 0 : i32
    return %arg0, %arg1, %c0_i32 : i32, i32, i32
  }
  func.func @transform_1(%arg0: i32, %arg1: i32) -> (i32, i32) {
    %c0_i32 = arith.constant 0 : i32
    %c0_i32_0 = arith.constant 0 : i32
    %c0_i32_1 = arith.constant 0 : i32
    return %c0_i32, %c0_i32_0 : i32, i32
  }
  func.func @transform_2(%arg0: i32, %arg1: i32) -> (i32, i32) {
    %c0_i32 = arith.constant 0 : i32
    %c0_i32_0 = arith.constant 0 : i32
    return %arg1, %c0_i32 : i32, i32
  }
  func.func @transform_3(%arg0: i32, %arg1: i32) -> (i32, i32, i32) {
    %c0_i32 = arith.constant 0 : i32
    %c0_i32_0 = arith.constant 0 : i32
    return %arg0, %arg1, %c0_i32 : i32, i32, i32
  }
}

</mosaic_0001>

<llo_original>
// kernel: tpu_custom_call.1
$region0: #{tpu_custom_call.1}
  #allocation0 [shape = 'u32[]', space=smem, size = 0x4, offset = 0x4, fixed_abs, tag = 'smem constant byte address 0x4 - core index']
  #allocation1 [shape = 'u32[144,128]{1,0:T(1,128)}', space=vmem, size = 0x12000, scoped, tag = 'internal scratch']
  %s0 = inlined_call_operand.vmem [shape: s32[2,16,1], index: 0, kind: input, shape index: {}]
  %s1 = inlined_call_operand.hbm [shape: bf16[192,128], index: 1, kind: input, shape index: {}]
  %s2 = inlined_call_operand.vmem [shape: f32[32,128], index: 2, kind: input, shape index: {}]
  %s3 = inlined_call_operand.hbm [shape: f32[2,16,128], index: 3, kind: output, shape index: {}]
  %s4 = sld [smem:[#allocation0]]
  $region49: #{tpu_custom_call.1} parent=0
    _
  %s6 = ssub.s32 1, %s4
  %s7 = scalar_select 0, %s6, %s4
  $region1: #{tpu_custom_call.1} parent=0
    #allocation2 [shape = 'u8[49152]{0}', space=vmem, size = 0xc000, scoped, tag = 'input window, operand 1, single buffered']
    #allocation3 [shape = 's32[2]{0}', space=sflag, size = 0x8, scoped, tag = 'scoped memory for tpu_custom_call.1']
    #allocation4 [shape = 's32[2]{0}', space=sflag, size = 0x8, scoped, tag = 'scoped memory for tpu_custom_call.1']
    #allocation5 [shape = 'u8[16384]{0}', space=vmem, size = 0x4000, scoped, tag = 'output window, operand 0']
    %8 = vsyncpa [#allocation3], 0
    %9 = vsyncpa [#allocation4], 0
    %s10 = scalar_lea.sflag [#allocation4], 1
    %11 = vsyncpa %s10, 0
    loop: start=0, step=1, limit=4
    $region2: #{tpu_custom_call.1} parent=1 // loop_pre_header
      _
    $region3: #{tpu_custom_call.1} parent=1 // loop_header
      %s13 = sphi 0, %s17
      %p14 = scmp.ge.s32.totalorder %s13, 4
      %s20 = sphi 0, %s32
      %s21 = sphi 0, %s28
      %s22 = sphi 0, %s20
      %s23 = sphi 0, %s21
      %s24 = sphi 0, %s22
      %s25 = sphi 0, %s23
      %s37 = sphi 0, %s39
      %s40 = sphi 0, %s37
      %s41 = sphi 0, %s40
      %s57 = sphi 0, %s41
      %s61 = sphi 0, %s61
      %s63 = sphi 0, %s61
      %s64 = sphi 0, %s63
      %s78 = sphi 0, %s64
      %s84 = sphi 0, %s86
      %s87 = sphi 0, %s84
      %s88 = sphi 0, %s87
      %s104 = sphi 0, %s88
      %s112 = sphi 0, %s114
      %s115 = sphi 0, %s112
      %s116 = sphi 0, %s115
      %s132 = sphi 0, %s116
    $region4: #{tpu_custom_call.1} parent=1 // loop_header_branch
      %16 = sbr.rel (%p14) target = $region8
    $region5: #{tpu_custom_call.1} parent=1 // loop_body
      %s18 = ssub.s32 %s13, 1
      %s19 = ssub.s32 %s13, 2
      %s26 = sadd.s32 1, %s21
      %p27 = scmp.ge.s32.totalorder %s26, 1
      %s28 = scalar_select %p27, 0, %s26
      %s29 = sadd.s32 1, %s20
      %s30 = scalar_select %p27, %s29, %s20
      %p31 = scmp.ge.s32.totalorder %s30, 2
      %s32 = scalar_select %p31, 0, %s30
      %s33 = ssub.s32 %s20, %s32
      %s34 = ssub.s32 %s21, %s28
      %s35 = sor.u32 %s33, %s34
      %p36 = scmp.eq.s32.totalorder %s35, 0
      %s38 = sadd.s32 %s37, 1
      %s39 = scalar_select %p36, %s37, %s38
      %p42 = pneg %p36
      %p43 = scmp.eq.s32.totalorder %s13, 1
      %p44 = por %p42, %p43
      %p45 = scmp.ne.s32.totalorder %s37, %s40
      %p46 = scmp.eq.s32.totalorder %s13, 0
      %p47 = por %p45, %p46
      %p48 = scmp.ne.s32.totalorder %s37, %s40
      %p49 = scmp.eq.s32.totalorder %s18, 1
      %p50 = por %p48, %p49
      %p51 = scmp.ne.s32.totalorder %s40, %s41
      %p52 = scmp.eq.s32.totalorder %s18, 0
      %p53 = por %p51, %p52
      %p54 = scmp.ne.s32.totalorder %s40, %s41
      %p55 = scmp.eq.s32.totalorder %s19, 1
      %p56 = por %p54, %p55
      %p58 = scmp.ne.s32.totalorder %s41, %s57
      %p59 = scmp.eq.s32.totalorder %s19, 0
      %p60 = por %p58, %p59
      %s62 = sadd.s32 %s61, 1
      %p65 = scmp.eq.s32.totalorder %s13, 1
      %p66 = scmp.ne.s32.totalorder %s61, %s63
      %p67 = scmp.eq.s32.totalorder %s13, 0
      %p68 = por %p66, %p67
      %p69 = scmp.ne.s32.totalorder %s61, %s63
      %p70 = scmp.eq.s32.totalorder %s18, 1
      %p71 = por %p69, %p70
      %p72 = scmp.ne.s32.totalorder %s63, %s64
      %p73 = scmp.eq.s32.totalorder %s18, 0
      %p74 = por %p72, %p73
      %p75 = scmp.ne.s32.totalorder %s63, %s64
      %p76 = scmp.eq.s32.totalorder %s19, 1
      %p77 = por %p75, %p76
      %p79 = scmp.ne.s32.totalorder %s64, %s78
      %p80 = scmp.eq.s32.totalorder %s19, 0
      %p81 = por %p79, %p80
      %s82 = ssub.s32 %s21, %s28
      %p83 = scmp.eq.s32.totalorder %s82, 0
      %s85 = sadd.s32 %s84, 1
      %s86 = scalar_select %p83, %s84, %s85
      %p89 = pneg %p83
      %p90 = scmp.eq.s32.totalorder %s13, 1
      %p91 = por %p89, %p90
      %p92 = scmp.ne.s32.totalorder %s84, %s87
      %p93 = scmp.eq.s32.totalorder %s13, 0
      %p94 = por %p92, %p93
      %p95 = scmp.ne.s32.totalorder %s84, %s87
      %p96 = scmp.eq.s32.totalorder %s18, 1
      %p97 = por %p95, %p96
      %p98 = scmp.ne.s32.totalorder %s87, %s88
      %p99 = scmp.eq.s32.totalorder %s18, 0
      %p100 = por %p98, %p99
      %p101 = scmp.ne.s32.totalorder %s87, %s88
      %p102 = scmp.eq.s32.totalorder %s19, 1
      %p103 = por %p101, %p102
      %p105 = scmp.ne.s32.totalorder %s88, %s104
      %p106 = scmp.eq.s32.totalorder %s19, 0
      %p107 = por %p105, %p106
      %s108 = ssub.s32 %s20, %s32
      %s109 = ssub.s32 %s21, %s28
      %s110 = sor.u32 %s108, %s109
      %p111 = scmp.eq.s32.totalorder %s110, 0
      %s113 = sadd.s32 %s112, 1
      %s114 = scalar_select %p111, %s112, %s113
      %p117 = pneg %p111
      %p118 = scmp.eq.s32.totalorder %s13, 1
      %p119 = por %p117, %p118
      %p120 = scmp.ne.s32.totalorder %s112, %s115
      %p121 = scmp.eq.s32.totalorder %s13, 0
      %p122 = por %p120, %p121
      %p123 = scmp.ne.s32.totalorder %s112, %s115
      %p124 = scmp.eq.s32.totalorder %s18, 1
      %p125 = por %p123, %p124
      %p126 = scmp.ne.s32.totalorder %s115, %s116
      %p127 = scmp.eq.s32.totalorder %s18, 0
      %p128 = por %p126, %p127
      %p129 = scmp.ne.s32.totalorder %s115, %s116
      %p130 = scmp.eq.s32.totalorder %s19, 1
      %p131 = por %p129, %p130
      %p133 = scmp.ne.s32.totalorder %s116, %s132
      %p134 = scmp.eq.s32.totalorder %s19, 0
      %p135 = por %p133, %p134
      %p136 = scmp.le.s32.totalorder 1, %s13
      %p137 = scmp.lt.s32.totalorder %s13, 3
      %p138 = pnand %p136, %p137
      %p139 = pneg %p138
      // Predicated region
      $region9: #{tpu_custom_call.1} parent=5 // pred_check
        _
      $region10: #{tpu_custom_call.1} parent=5 // pred_check_branch
        %141 = sbr.rel (%p138) target = $region12
      $region11: #{tpu_custom_call.1} parent=5 // pred_region
        %s142 = ssub.s32 %s13, 1
        // Predicated region
        $region13: #{tpu_custom_call.1} parent=11 // pred_check
          %p143 = pneg %p74
        $region14: #{tpu_custom_call.1} parent=11 // pred_check_branch
          %145 = sbr.rel (%p143) target = $region16
        $region15: #{tpu_custom_call.1} parent=11 // pred_region
          %s147 = ssub.s32 1536, 1536
          %148 = vsyncadd [#allocation3], %s147
          %s149 = sshll.u32 [#allocation2], 4
          %s150 = int_to_ptr.vmem [resolvable:$true] %s149
          %155 = dma.hbm_to_vmem [thread:$0]  %s1, 1536, %s150, [#allocation3], 64, 64, 4
        $region16: #{tpu_custom_call.1} parent=11 // pred_fallthru
          _
        // Predicated region
        $region17: #{tpu_custom_call.1} parent=11 // pred_check
          %p156 = pneg %p100
        $region18: #{tpu_custom_call.1} parent=11 // pred_check_branch
          %158 = sbr.rel (%p156) target = $region20
        $region19: #{tpu_custom_call.1} parent=11 // pred_region
          %s159 = smul.u32 2, %s23
          %p160 = scmp.lt.s32.totalorder %s159, 3
          %s161 = scalar_select %p160, %s159, 3
          %s162 = smul.addr %s161, 8
          %s163 = scalar_lea.vmem %s2, %s162
          %s164 = smul.u32 2, %s23
        $region20: #{tpu_custom_call.1} parent=11 // pred_fallthru
          _
      $region12: #{tpu_custom_call.1} parent=5 // pred_fallthru
        _
      %p165 = scmp.lt.s32.totalorder %s13, 2
      // Predicated region
      $region21: #{tpu_custom_call.1} parent=5 // pred_check
        %p166 = pneg %p165
      $region22: #{tpu_custom_call.1} parent=5 // pred_check_branch
        %168 = sbr.rel (%p166) target = $region24
      $region23: #{tpu_custom_call.1} parent=5 // pred_region
        // Predicated region
        $region25: #{tpu_custom_call.1} parent=23 // pred_check
          %p169 = pneg %p47
        $region26: #{tpu_custom_call.1} parent=23 // pred_check_branch
          %171 = sbr.rel (%p169) target = $region28
        $region27: #{tpu_custom_call.1} parent=23 // pred_region
          %s172 = smul.u32 2, %s21
          %p173 = scmp.lt.s32.totalorder %s20, 1
          %s174 = scalar_select %p173, %s20, 1
          %p175 = scmp.lt.s32.totalorder %s172, 1
          %s176 = scalar_select %p175, %s172, 1
          %s177 = smul.addr %s174, 2
          %s178 = sadd.s32 %s176, %s177
          %s179 = smul.addr %s178, 8
          %s180 = scalar_lea.vmem %s0, %s179
          %s181 = smul.u32 2, %s21
        $region28: #{tpu_custom_call.1} parent=23 // pred_fallthru
          _
      $region24: #{tpu_custom_call.1} parent=5 // pred_fallthru
        _
      %p182 = scmp.le.s32.totalorder 1, %s13
      %p183 = scmp.lt.s32.totalorder %s13, 3
      %p184 = pnand %p182, %p183
      %p185 = pneg %p184
      // Predicated region
      $region29: #{tpu_custom_call.1} parent=5 // pred_check
        _
      $region30: #{tpu_custom_call.1} parent=5 // pred_check_branch
        %187 = sbr.rel (%p184) target = $region32
      $region31: #{tpu_custom_call.1} parent=5 // pred_region
        %s188 = ssub.s32 %s13, 1
        // Predicated region
        $region33: #{tpu_custom_call.1} parent=31 // pred_check
          %p189 = pneg %p74
        $region34: #{tpu_custom_call.1} parent=31 // pred_check_branch
          %191 = sbr.rel (%p189) target = $region36
        $region35: #{tpu_custom_call.1} parent=31 // pred_region
          %192 = dma.done [#allocation3], 1536
        $region36: #{tpu_custom_call.1} parent=31 // pred_fallthru
          _
        %s193 = smul.u32 2, %s23
        %p194 = scmp.lt.s32.totalorder %s22, 1
        %s195 = scalar_select %p194, %s22, 1
        %p196 = scmp.lt.s32.totalorder %s193, 1
        %s197 = scalar_select %p196, %s193, 1
        %s198 = smul.addr %s195, 2
        %s199 = sadd.s32 %s197, %s198
        %s200 = smul.addr %s199, 8
        %s201 = scalar_lea.vmem %s0, %s200
        %p202 = pneg %p53
        %p203 = pneg %p50
        %p204 = pneg %p74
        %p205 = pneg %p71
        %s206 = smul.u32 2, %s23
        %p207 = scmp.lt.s32.totalorder %s206, 3
        %s208 = scalar_select %p207, %s206, 3
        %s209 = smul.addr %s208, 8
        %s210 = scalar_lea.vmem %s2, %s209
        %p211 = pneg %p100
        %p212 = pneg %p97
        %p213 = pneg %p128
        %p214 = pneg %p125
        %s215 = sand.u32 %s115, 1
        %s216 = scalar_lea.sflag [#allocation4], %s215
        %s217 = sand.u32 %s115, 1
        %s218 = smul.addr %s217, 16
        %s219 = scalar_lea.vmem [#allocation5], %s218
        %s220 = smul.u32 2, %s23
        %p221 = scmp.lt.s32.totalorder %s22, 1
        %s222 = scalar_select %p221, %s22, 1
        %p223 = scmp.lt.s32.totalorder %s220, 1
        %s224 = scalar_select %p223, %s220, 1
        %s225 = smul.addr %s222, 2
        %s226 = sadd.s32 %s224, %s225
        %s227 = smul.addr %s226, 8
        %s228 = scalar_lea.vmem %s0, %s227
        %s229 = smul.u32 2, %s23
        %s230 = smul.u32 2, %s23
        %p231 = scmp.lt.s32.totalorder %s230, 3
        %s232 = scalar_select %p231, %s230, 3
        %s233 = smul.addr %s232, 8
        %s234 = scalar_lea.vmem %s2, %s233
        %s235 = smul.u32 2, %s23
        %s236 = smul.u32 2, %s23
        %v238 = vld [vmem:[%s228] sm:$0xff]
        %v239 = vld [vmem:[%s228 + $0x8] sm:$0xff]
        %v240 = vlaneseq
        %v241 = vand.u32 %v240, 127
        %v242 = vadd.s32 %v241, 128
        %243 = vset.pattern.permute.xlu0 0
        %244 = vperm.xlu0 %243, %v238
        %v245 = vpop.permute.xlu0 %244
        %246 = vset.pattern.permute.xlu0 0
        %247 = vperm.xlu0 %246, %v239
        %v248 = vpop.permute.xlu0 %247
        %vm249 = vcmp.eq.s32.totalorder %v241, %v245
        %vm250 = vcmp.eq.s32.totalorder %v242, %v245
        %vm251 = vcmp.eq.s32.totalorder %v241, %v248
        %vm252 = vcmp.eq.s32.totalorder %v242, %v248
        %v253 = vadd.s32 %v238, 64
        %v254 = vadd.s32 %v239, 64
        %255 = vset.pattern.permute.xlu0 0
        %256 = vperm.xlu0 %255, %v253
        %v257 = vpop.permute.xlu0 %256
        %258 = vset.pattern.permute.xlu0 0
        %259 = vperm.xlu0 %258, %v254
        %v260 = vpop.permute.xlu0 %259
        %vm261 = vcmp.eq.s32.totalorder %v241, %v257
        %vm262 = vcmp.eq.s32.totalorder %v242, %v257
        %vm263 = vcmp.eq.s32.totalorder %v241, %v260
        %vm264 = vcmp.eq.s32.totalorder %v242, %v260
        %vm265 = vmor %vm249, %vm261
        %vm266 = vmor %vm250, %vm262
        %vm267 = vmor %vm251, %vm263
        %vm268 = vmor %vm252, %vm264
        %v269 = vadd.s32 %v238, 128
        %v270 = vadd.s32 %v239, 128
        %271 = vset.pattern.permute.xlu0 0
        %272 = vperm.xlu0 %271, %v269
        %v273 = vpop.permute.xlu0 %272
        %274 = vset.pattern.permute.xlu0 0
        %275 = vperm.xlu0 %274, %v270
        %v276 = vpop.permute.xlu0 %275
        %vm277 = vcmp.eq.s32.totalorder %v241, %v273
        %vm278 = vcmp.eq.s32.totalorder %v242, %v273
        %vm279 = vcmp.eq.s32.totalorder %v241, %v276
        %vm280 = vcmp.eq.s32.totalorder %v242, %v276
        %vm281 = vmor %vm265, %vm277
        %vm282 = vmor %vm266, %vm278
        %vm283 = vmor %vm267, %vm279
        %vm284 = vmor %vm268, %vm280
        %v285 = vsel %vm281, 1, 0
        %v286 = vsel %vm282, 1, 0
        %v287 = vsel %vm283, 1, 0
        %v288 = vsel %vm284, 1, 0
        %v289 = vcvt.s32.f32 %v285
        %v290 = vcvt.s32.f32 %v286
        %v291 = vcvt.s32.f32 %v287
        %v292 = vcvt.s32.f32 %v288
        %v293 = vpack.c.bf16 %v291, %v289
        %v294 = vpack.c.bf16 %v292, %v290
        %v295 = vld [vmem:[#allocation2] sm:$0xf]
        %v296 = vld [vmem:[#allocation2 + $0x4] sm:$0xf]
        %v297 = vld [vmem:[#allocation2 + $0x8] sm:$0xf]
        %v298 = vld [vmem:[#allocation2 + $0xc] sm:$0xf]
        %v299 = vld [vmem:[#allocation2 + $0x10] sm:$0xf]
        %v300 = vld [vmem:[#allocation2 + $0x14] sm:$0xf]
        %v301 = vld [vmem:[#allocation2 + $0x18] sm:$0xf]
        %v302 = vld [vmem:[#allocation2 + $0x1c] sm:$0xf]
        %v303 = vld [vmem:[#allocation2 + $0x20] sm:$0xf]
        %v304 = vld [vmem:[#allocation2 + $0x24] sm:$0xf]
        %v305 = vld [vmem:[#allocation2 + $0x28] sm:$0xf]
        %v306 = vld [vmem:[#allocation2 + $0x2c] sm:$0xf]
        %v307 = vld [vmem:[#allocation2 + $0x30] sm:$0xf]
        %v308 = vld [vmem:[#allocation2 + $0x34] sm:$0xf]
        %v309 = vld [vmem:[#allocation2 + $0x38] sm:$0xf]
        %v310 = vld [vmem:[#allocation2 + $0x3c] sm:$0xf]
        %v311 = vld [vmem:[#allocation2 + $0x40] sm:$0xf]
        %v312 = vld [vmem:[#allocation2 + $0x44] sm:$0xf]
        %v313 = vld [vmem:[#allocation2 + $0x48] sm:$0xf]
        %v314 = vld [vmem:[#allocation2 + $0x4c] sm:$0xf]
        %v315 = vld [vmem:[#allocation2 + $0x50] sm:$0xf]
        %v316 = vld [vmem:[#allocation2 + $0x54] sm:$0xf]
        %v317 = vld [vmem:[#allocation2 + $0x58] sm:$0xf]
        %v318 = vld [vmem:[#allocation2 + $0x5c] sm:$0xf]
        %v319 = vld [vmem:[%s234] sm:$0xff]
        %v320 = vld [vmem:[%s234 + $0x8] sm:$0xff]
        %v345 = vunpack.c.l.b16 %v295
        %v346 = vunpack.c.l.b16 %v296
        %v347 = vunpack.c.l.b16 %v297
        %v348 = vunpack.c.l.b16 %v298
        %v349 = vunpack.c.l.b16 %v299
        %v350 = vunpack.c.l.b16 %v300
        %v351 = vunpack.c.l.b16 %v301
        %v352 = vunpack.c.l.b16 %v302
        %v353 = vunpack.c.l.b16 %v303
        %v354 = vunpack.c.l.b16 %v304
        %v355 = vunpack.c.l.b16 %v305
        %v356 = vunpack.c.l.b16 %v306
        %v357 = vunpack.c.l.b16 %v307
        %v358 = vunpack.c.l.b16 %v308
        %v359 = vunpack.c.l.b16 %v309
        %v360 = vunpack.c.l.b16 %v310
        %v361 = vunpack.c.l.b16 %v311
        %v362 = vunpack.c.l.b16 %v312
        %v363 = vunpack.c.l.b16 %v313
        %v364 = vunpack.c.l.b16 %v314
        %v365 = vunpack.c.l.b16 %v315
        %v366 = vunpack.c.l.b16 %v316
        %v367 = vunpack.c.l.b16 %v317
        %v368 = vunpack.c.l.b16 %v318
        %v369 = vpack.c.b16 %v346, %v345
        %v370 = vpack.c.b16 %v348, %v347
        %v371 = vpack.c.b16 %v350, %v349
        %v372 = vpack.c.b16 %v352, %v351
        %v373 = vpack.c.b16 %v354, %v353
        %v374 = vpack.c.b16 %v356, %v355
        %v375 = vpack.c.b16 %v358, %v357
        %v376 = vpack.c.b16 %v360, %v359
        %v377 = vpack.c.b16 %v362, %v361
        %v378 = vpack.c.b16 %v364, %v363
        %v379 = vpack.c.b16 %v366, %v365
        %v380 = vpack.c.b16 %v368, %v367
        %vm393 = vcmask 523264
        %v395 = vsel %vm393, %v294, 0
        %397 = vmatprep.subr.bf16.mxu0 0
        %398 = vmatpush1.bf16.msra.mxu0 %v369
        %399 = vmatprep.subr.bf16.mxu0 0
        %400 = vmatpush1.bf16.msra.mxu0 %v370
        %401 = vmatprep.subr.bf16.mxu0 0
        %402 = vmatpush1.bf16.msra.mxu0 %v371
        %403 = vmatprep.subr.bf16.mxu0 0
        %404 = vmatpush1.bf16.msra.mxu0 %v372
        %405 = vmatprep.subr.bf16.mxu0 0
        %406 = vmatpush1.bf16.msra.mxu0 %v373
        %407 = vmatprep.subr.bf16.mxu0 0
        %408 = vmatpush1.bf16.msra.mxu0 %v374
        %409 = vmatprep.subr.bf16.mxu0 0
        %410 = vmatpush1.bf16.msra.mxu0 %v375
        %411 = vmatprep.subr.bf16.mxu0 0
        %412 = vmatpush1.bf16.msra.mxu0 %v376
        %413 = vmatprep.subr.bf16.mxu0 0
        %414 = vmatpush1.bf16.msra.mxu0 %v377
        %415 = vmatprep.subr.bf16.mxu0 0
        %416 = vmatpush1.bf16.msra.mxu0 %v378
        %417 = vmatprep.subr.bf16.mxu0 0
        %418 = vmatpush1.bf16.msra.mxu0 %v379
        %419 = vmatprep.subr.bf16.mxu0 0
        %420 = vmatpush1.bf16.msra.mxu0 %v380
        %421 = vmatprep.subr.bf16.mxu0 0
        %422 = vmatpush1.bf16.msra.mxu0 0
        %423 = vmatprep.subr.bf16.mxu0 0
        %424 = vmatpush1.bf16.msra.mxu0 0
        %425 = vmatprep.subr.bf16.mxu0 0
        %426 = vmatpush1.bf16.msra.mxu0 0
        %427 = vmatprep.subr.bf16.mxu0 0
        %428 = vmatpush1.bf16.msra.mxu0 0
        %429 = vmatprep.mubr.bf16.mxu0 %v395
        %430 = vmatmul.mubr.bf16.gmra.mrb[0].mxu0 %v293
        %v431 = vpop.f32.mrb[0].mxu0
        %v432 = vadd.f32 %v319, %v431
        %v433 = vpop.f32.mrb[0].mxu0
        %v434 = vpop.f32.mrb[0].mxu0
        %v435 = vadd.f32 %v320, %v434
        %v436 = vpop.f32.mrb[0].mxu0
        %437 = vdwg.mxu0
        %438 = vst [vmem:[%s219] sm:$0xff] %v432
        %439 = vst [vmem:[%s219 + $0x8] sm:$0xff] %v435
        %s440 = sand.u32 %s115, 1
        %s441 = scalar_lea.sflag [#allocation4], %s440
        %s442 = sand.u32 %s115, 1
        %s443 = smul.addr %s442, 16
        %s444 = scalar_lea.vmem [#allocation5], %s443
        // Predicated region
        $region37: #{tpu_custom_call.1} parent=31 // pred_check
          %p445 = pneg %p125
        $region38: #{tpu_custom_call.1} parent=31 // pred_check_branch
          %447 = sbr.rel (%p445) target = $region40
        $region39: #{tpu_custom_call.1} parent=31 // pred_region
          %s448 = smul.u32 2, %s23
          %s450 = ssub.s32 256, 256
          %451 = vsyncadd %s441, %s450
          %s452 = smul.addr %s22, 2
          %s453 = sadd.s32 %s448, %s452
          %s454 = smul.addr %s453, 128
          %s455 = scalar_lea.hbm %s3, %s454
          %s456 = sshll.u32 %s444, 4
          %s457 = int_to_ptr.vmem [resolvable:$true] %s456
          %462 = dma.vmem_to_hbm [thread:$0]  %s457, 256, %s455, %s441, 128, 128, 8
        $region40: #{tpu_custom_call.1} parent=31 // pred_fallthru
          _
      $region32: #{tpu_custom_call.1} parent=5 // pred_fallthru
        _
      %p463 = scmp.le.s32.totalorder 2, %s13
      // Predicated region
      $region41: #{tpu_custom_call.1} parent=5 // pred_check
        %p464 = pneg %p463
      $region42: #{tpu_custom_call.1} parent=5 // pred_check_branch
        %466 = sbr.rel (%p464) target = $region44
      $region43: #{tpu_custom_call.1} parent=5 // pred_region
        %s467 = ssub.s32 %s13, 2
        // Predicated region
        $region45: #{tpu_custom_call.1} parent=43 // pred_check
          %p468 = pneg %p131
        $region46: #{tpu_custom_call.1} parent=43 // pred_check_branch
          %470 = sbr.rel (%p468) target = $region48
        $region47: #{tpu_custom_call.1} parent=43 // pred_region
          %s471 = sand.u32 %s116, 1
          %s472 = scalar_lea.sflag [#allocation4], %s471
          %s473 = sand.u32 %s116, 1
          %s474 = smul.addr %s473, 16
          %s475 = scalar_lea.vmem [#allocation5], %s474
          %476 = dma.done %s472, 256
        $region48: #{tpu_custom_call.1} parent=43 // pred_fallthru
          _
      $region44: #{tpu_custom_call.1} parent=5 // pred_fallthru
        _
    $region6: #{tpu_custom_call.1} parent=1 // loop_footer
      %s17 = sadd.s32 1, %s13
    $region7: #{tpu_custom_call.1} parent=1 // loop_footer_branch
      %12 = sbr.rel target = $region3
    $region8: #{tpu_custom_call.1} parent=1 // loop_exit
      _
    %477 = vsyncpa [#allocation3], 1
    %s478 = scalar_lea.sflag [#allocation3], 1
    %479 = vsyncpa %s478, 1
    %480 = vsyncpa [#allocation4], 1
    %s481 = scalar_lea.sflag [#allocation4], 1
    %482 = vsyncpa %s481, 1

</llo_original>
